<compile_context>
chip_gen: v5e
topology: v5e:2x2
jax: 0.10.0
libtpu: 0.0.40
codegen_flags: <defaults>
</compile_context>

<pallas_src>
import functools

import jax
import jax.numpy as jnp
from jax import lax
from jax.experimental import pallas as pl
from jax.experimental.pallas import tpu as pltpu


def _stats_kernel(pT_ref, wT_ref, sum_ref, sumsq_ref):
    """Accumulate per-channel sum and sum-of-squares of the (bias-free) conv."""
    @pl.when(pl.program_id(0) == 0)
    def _():
        sum_ref[...] = jnp.zeros_like(sum_ref)
        sumsq_ref[...] = jnp.zeros_like(sumsq_ref)

    conv = jnp.dot(wT_ref[...], pT_ref[...],
                   preferred_element_type=jnp.float32)            # (Cout, tm)
    sum_ref[...] += jnp.sum(conv, axis=1, keepdims=True)          # (Cout, 1)
    sumsq_ref[...] += jnp.sum(conv * conv, axis=1, keepdims=True)  # (Cout, 1)


def _apply_kernel(pT_ref, wT_ref, scale_ref, shift_ref, a_main_ref, a_side_ref,
                  out_ref, *, cin, cout):
    # conv (no bias -- it cancels under batch-stat BN) + folded BN affine.
    conv = jnp.dot(wT_ref[...], pT_ref[...],
                   preferred_element_type=jnp.float32)            # (Cout, tm)
    bn = conv * scale_ref[...] + shift_ref[...]

    # MaxPool2d(2,2): the 4 pool taps are the im2col rows for patch positions
    # (kh,kw) = (1,1),(1,2),(2,1),(2,2)  ->  row blocks 4,5,7,8 (each cin wide).
    p11 = pT_ref[4 * cin:5 * cin, :]
    p12 = pT_ref[5 * cin:6 * cin, :]
    p21 = pT_ref[7 * cin:8 * cin, :]
    p22 = pT_ref[8 * cin:9 * cin, :]
    side = jnp.maximum(jnp.maximum(p11, p12), jnp.maximum(p21, p22))  # (Cin,tm)

    # concat([main, side]) along the channel (sublane) axis + PReLU(16).
    out_ref[0:cout, :] = jnp.where(bn >= 0, bn, a_main_ref[...] * bn)
    out_ref[cout:cout + cin, :] = jnp.where(side >= 0, side,
                                            a_side_ref[...] * side)


def initial_encoding(x, conv_w, conv_b, bn_gamma, bn_beta, prelu_a, *, tm=4096):
    """x: (N, Cin, H, W) float32 NCHW.  Returns (N, Cout+Cin, H//2, W//2)."""
    N, Cin, H, W = x.shape
    assert H % 2 == 0 and W % 2 == 0
    Cout = conv_w.shape[0]
    Ctot = Cout + Cin
    Ho, Wo = H // 2, W // 2
    M = N * Ho * Wo
    K9C = 9 * Cin

    # ----- im2col in transposed layout: rows = (kh,kw,cin), lanes = pixels ---
    # TODO(synk): im2col is still materialized in HBM by XLA; building the 9
    # strided views in-kernel from x_pad would cut total HBM bytes another ~2x.
    x_pad = jnp.pad(x, ((0, 0), (0, 0), (1, 1), (1, 1)))
    slabs = [x_pad[:, :, kh:kh + 2 * Ho:2, kw:kw + 2 * Wo:2]       # (N,Cin,Ho,Wo)
             for kh in range(3) for kw in range(3)]
    patchesT = jnp.transpose(jnp.stack(slabs, axis=0),
                             (0, 2, 1, 3, 4)).reshape(K9C, M)      # (27, M)

    # (Cout,Cin,kh,kw) -> (Cout, (kh,kw,cin)) to match the patch row ordering.
    wT = jnp.transpose(conv_w, (0, 2, 3, 1)).reshape(Cout, K9C)    # (13, 27)

    # Pad the pixel axis to a multiple of the lane tile.  Zero columns are
    # harmless for the statistics because there is no conv bias (they add
    # exactly 0 to both sums); the real divisor M is used below.
    tm = min(tm, pl.cdiv(M, 128) * 128)
    tm = pl.cdiv(tm, 128) * 128
    Mp = pl.cdiv(M, tm) * tm
    if Mp > M:
        patchesT = jnp.pad(patchesT, ((0, 0), (0, Mp - M)))
    nt = Mp // tm

    def full(shape):  # small parameter arrays: one resident block
        return pl.BlockSpec(shape, lambda i: (0, 0))

    # Per-tile VMEM (double-buffered) is ~ (27+16)*4*tm*2 bytes (<2 MB at
    # tm=4096), well under the scoped VMEM limit on v5e/v6e/v7x.

    # ---------------- pass 1: global BatchNorm statistics -------------------
    bytes_stats = 4 * (K9C * Mp + Cout * K9C + 2 * Cout)
    s1, s2 = pl.pallas_call(
        _stats_kernel,
        out_shape=(jax.ShapeDtypeStruct((Cout, 1), jnp.float32),
                   jax.ShapeDtypeStruct((Cout, 1), jnp.float32)),
        grid=(nt,),
        in_specs=[pl.BlockSpec((K9C, tm), lambda i: (0, i)),
                  full((Cout, K9C))],
        out_specs=(full((Cout, 1)), full((Cout, 1))),
        compiler_params=pltpu.CompilerParams(
            dimension_semantics=("arbitrary",)),
        cost_estimate=pl.CostEstimate(flops=2 * Cout * K9C * Mp,
                                      transcendentals=0,
                                      bytes_accessed=bytes_stats),
    )(patchesT, wT)

    # Fold BN into a single affine (tiny per-channel math, outside the kernel).
    mean = s1 / M
    var = jnp.maximum(s2 / M - mean * mean, 0.0)
    scale = bn_gamma.reshape(Cout, 1) * lax.rsqrt(var + 1e-5)
    shift = bn_beta.reshape(Cout, 1) - mean * scale
    # conv_b is intentionally unused: a per-channel constant bias is removed
    # exactly by training-mode BatchNorm (it cancels in conv - batch_mean).
    del conv_b
    # TODO(synk): BatchNorm running_mean/running_var buffer updates are a
    # training side effect, not part of the returned tensor, so omitted.

    a_main = prelu_a[:Cout].reshape(Cout, 1)
    a_side = prelu_a[Cout:Ctot].reshape(Cin, 1)

    # ------------- pass 2: conv + BN affine + maxpool + PReLU ---------------
    bytes_apply = 4 * ((K9C + Ctot) * Mp + Cout * K9C + 3 * Cout + Cin)
    kern = functools.partial(_apply_kernel, cin=Cin, cout=Cout)
    outT = pl.pallas_call(
        kern,
        out_shape=jax.ShapeDtypeStruct((Ctot, Mp), jnp.float32),
        grid=(nt,),
        in_specs=[pl.BlockSpec((K9C, tm), lambda i: (0, i)),
                  full((Cout, K9C)), full((Cout, 1)), full((Cout, 1)),
                  full((Cout, 1)), full((Cin, 1))],
        out_specs=pl.BlockSpec((Ctot, tm), lambda i: (0, i)),
        compiler_params=pltpu.CompilerParams(
            dimension_semantics=("parallel",)),
        cost_estimate=pl.CostEstimate(
            flops=2 * Cout * K9C * Mp + 8 * Ctot * Mp,
            transcendentals=0,
            bytes_accessed=bytes_apply),
    )(patchesT, wT, scale, shift, a_main, a_side)

    # (Ctot, M) -> (N, Ctot, Ho, Wo)
    return jnp.transpose(outT[:, :M].reshape(Ctot, N, Ho, Wo), (1, 0, 2, 3))


def _reference(x, conv_w, conv_b, bn_gamma, bn_beta, prelu_a):
    """Pure-JAX reference mirroring the PyTorch forward (training-mode BN)."""
    conv = lax.conv_general_dilated(
        x, conv_w, window_strides=(2, 2), padding=((1, 1), (1, 1)),
        dimension_numbers=("NCHW", "OIHW", "NCHW"))
    conv = conv + conv_b[None, :, None, None]
    mean = jnp.mean(conv, axis=(0, 2, 3), keepdims=True)
    var = jnp.mean((conv - mean) ** 2, axis=(0, 2, 3), keepdims=True)
    bn = bn_gamma[None, :, None, None] * (conv - mean) / jnp.sqrt(var + 1e-5) \
        + bn_beta[None, :, None, None]
    side = lax.reduce_window(x, -jnp.inf, lax.max,
                             (1, 1, 2, 2), (1, 1, 2, 2), "VALID")
    cat = jnp.concatenate([bn, side], axis=1)
    a = prelu_a[None, :, None, None]
    return jnp.where(cat >= 0, cat, a * cat)


if __name__ == "__main__":
    key = jax.random.PRNGKey(0)
    k_x, k_w, k_b, k_g, k_be, k_a = jax.random.split(key, 6)

    N, Cin, H, W = 2, 3, 32, 32
    Cout = 13
    Ctot = Cout + Cin  # 16, matches PReLU(16)

    x = jax.random.normal(k_x, (N, Cin, H, W), jnp.float32)
    conv_w = 0.1 * jax.random.normal(k_w, (Cout, Cin, 3, 3), jnp.float32)
    conv_b = 0.1 * jax.random.normal(k_b, (Cout,), jnp.float32)
    bn_gamma = 1.0 + 0.1 * jax.random.normal(k_g, (Cout,), jnp.float32)
    bn_beta = 0.1 * jax.random.normal(k_be, (Cout,), jnp.float32)
    prelu_a = 0.25 + 0.05 * jax.random.normal(k_a, (Ctot,), jnp.float32)

    # tm=128 -> M=512 pixels / 128 = 4 grid steps; exercises the tiled
    # stats accumulation and the multi-tile apply pass.
    out = jax.block_until_ready(
        initial_encoding(x, conv_w, conv_b, bn_gamma, bn_beta, prelu_a, tm=128))

    ref = _reference(x, conv_w, conv_b, bn_gamma, bn_beta, prelu_a)
    assert out.shape == (N, Ctot, H // 2, W // 2), out.shape
    assert jnp.allclose(out, ref, atol=1e-4, rtol=1e-4), \
        float(jnp.max(jnp.abs(out - ref)))

    print("KERNEL_OK")
</pallas_src>

<mosaic_0001>
module attributes {stable_mosaic.version = 11 : i64} {
  func.func @_stats_kernel(%arg0: i32, %arg1: memref<27x128xf32, #tpu.memory_space<vmem>>, %arg2: memref<13x27xf32, #tpu.memory_space<vmem>>, %arg3: memref<13x1xf32, #tpu.memory_space<vmem>>, %arg4: memref<13x1xf32, #tpu.memory_space<vmem>>) attributes {dimension_semantics = [#tpu.dimension_semantics<arbitrary>], iteration_bounds = array<i64: 4>, scalar_prefetch = 0 : i64, scratch_operands = 0 : i64, tpu.core_type = #tpu.core_type<tc>, window_params = [{transform_indices = @transform_0, window_bounds = array<i64: 27, 128>}, {pipeline_mode = #tpu.pipeline_mode<synchronous>, transform_indices = @transform_1, window_bounds = array<i64: 13, 27>}, {pipeline_mode = #tpu.pipeline_mode<synchronous>, transform_indices = @transform_2, window_bounds = array<i64: 13, 1>}, {pipeline_mode = #tpu.pipeline_mode<synchronous>, transform_indices = @transform_3, window_bounds = array<i64: 13, 1>}]} {
    %c0_i32 = arith.constant 0 : i32
    %0 = arith.cmpi eq, %arg0, %c0_i32 : i32
    %1 = arith.extui %0 : i1 to i32
    %c0_i32_0 = arith.constant 0 : i32
    %2 = arith.cmpi ne, %1, %c0_i32_0 : i32
    scf.if %2 {
      %cst_14 = arith.constant 0.000000e+00 : f32
      %17 = vector.broadcast %cst_14 : f32 to vector<13x1xf32>
      %c0_15 = arith.constant 0 : index
      %c0_16 = arith.constant 0 : index
      %18 = vector.load %arg3[%c0_15, %c0_16] : memref<13x1xf32, #tpu.memory_space<vmem>>, vector<13x1xf32>
      tpu.vector_store %arg3[%c0_15, %c0_16], %17 {strides = array<i32>} : memref<13x1xf32, #tpu.memory_space<vmem>>, vector<13x1xf32>,
      %cst_17 = arith.constant 0.000000e+00 : f32
      %19 = vector.broadcast %cst_17 : f32 to vector<13x1xf32>
      %c0_18 = arith.constant 0 : index
      %c0_19 = arith.constant 0 : index
      %20 = vector.load %arg4[%c0_18, %c0_19] : memref<13x1xf32, #tpu.memory_space<vmem>>, vector<13x1xf32>
      tpu.vector_store %arg4[%c0_18, %c0_19], %19 {strides = array<i32>} : memref<13x1xf32, #tpu.memory_space<vmem>>, vector<13x1xf32>,
    } else {
    }
    %c0 = arith.constant 0 : index
    %c0_1 = arith.constant 0 : index
    %3 = vector.load %arg2[%c0, %c0_1] : memref<13x27xf32, #tpu.memory_space<vmem>>, vector<13x27xf32>
    %c0_2 = arith.constant 0 : index
    %c0_3 = arith.constant 0 : index
    %4 = vector.load %arg1[%c0_2, %c0_3] : memref<27x128xf32, #tpu.memory_space<vmem>>, vector<27x128xf32>
    %cst = arith.constant dense<0.000000e+00> : vector<13x128xf32>
    %5 = tpu.matmul %3, %4, %cst {dimension_numbers = #tpu.dot_dimension_numbers<[1], [0], [0], [1], [0, 0, 1, 1], [], []>} : vector<13x27xf32>, vector<27x128xf32>, vector<13x128xf32> -> vector<13x128xf32>
    %c0_4 = arith.constant 0 : index
    %c0_5 = arith.constant 0 : index
    %6 = vector.load %arg3[%c0_4, %c0_5] : memref<13x1xf32, #tpu.memory_space<vmem>>, vector<13x1xf32>
    %cst_6 = arith.constant dense<0.000000e+00> : vector<13xf32>
    %7 = vector.multi_reduction <add>, %5, %cst_6 [1] : vector<13x128xf32> to vector<13xf32>
    %8 = vector.shape_cast %7 : vector<13xf32> to vector<13x1xf32>
    %9 = arith.addf %6, %8 : vector<13x1xf32>
    %c0_7 = arith.constant 0 : index
    %c0_8 = arith.constant 0 : index
    %10 = vector.load %arg3[%c0_7, %c0_8] : memref<13x1xf32, #tpu.memory_space<vmem>>, vector<13x1xf32>
    tpu.vector_store %arg3[%c0_7, %c0_8], %9 {strides = array<i32>} : memref<13x1xf32, #tpu.memory_space<vmem>>, vector<13x1xf32>,
    %c0_9 = arith.constant 0 : index
    %c0_10 = arith.constant 0 : index
    %11 = vector.load %arg4[%c0_9, %c0_10] : memref<13x1xf32, #tpu.memory_space<vmem>>, vector<13x1xf32>
    %12 = arith.mulf %5, %5 : vector<13x128xf32>
    %cst_11 = arith.constant dense<0.000000e+00> : vector<13xf32>
    %13 = vector.multi_reduction <add>, %12, %cst_11 [1] : vector<13x128xf32> to vector<13xf32>
    %14 = vector.shape_cast %13 : vector<13xf32> to vector<13x1xf32>
    %15 = arith.addf %11, %14 : vector<13x1xf32>
    %c0_12 = arith.constant 0 : index
    %c0_13 = arith.constant 0 : index
    %16 = vector.load %arg4[%c0_12, %c0_13] : memref<13x1xf32, #tpu.memory_space<vmem>>, vector<13x1xf32>
    tpu.vector_store %arg4[%c0_12, %c0_13], %15 {strides = array<i32>} : memref<13x1xf32, #tpu.memory_space<vmem>>, vector<13x1xf32>,
    return
  }
  func.func @transform_0(%arg0: i32) -> (i32, i32) {
    %c0_i32 = arith.constant 0 : i32
    %c0_i32_0 = arith.constant 0 : i32
    return %c0_i32, %arg0 : i32, i32
  }
  func.func @transform_1(%arg0: i32) -> (i32, i32) {
    %c0_i32 = arith.constant 0 : i32
    %c0_i32_0 = arith.constant 0 : i32
    %c0_i32_1 = arith.constant 0 : i32
    return %c0_i32, %c0_i32_0 : i32, i32
  }
  func.func @transform_2(%arg0: i32) -> (i32, i32) {
    %c0_i32 = arith.constant 0 : i32
    %c0_i32_0 = arith.constant 0 : i32
    %c0_i32_1 = arith.constant 0 : i32
    return %c0_i32, %c0_i32_0 : i32, i32
  }
  func.func @transform_3(%arg0: i32) -> (i32, i32) {
    %c0_i32 = arith.constant 0 : i32
    %c0_i32_0 = arith.constant 0 : i32
    %c0_i32_1 = arith.constant 0 : i32
    return %c0_i32, %c0_i32_0 : i32, i32
  }
}

</mosaic_0001>

<llo_original>
// kernel: tpu_custom_call.1
$region0: #{tpu_custom_call.1}
  #allocation0 [shape = 'u32[]', space=smem, size = 0x4, offset = 0x4, fixed_abs, tag = 'smem constant byte address 0x4 - core index']
  #allocation1 [shape = 'u32[72,128]{1,0:T(1,128)}', space=vmem, size = 0x9000, scoped, tag = 'internal scratch']
  %s0 = inlined_call_operand.hbm [shape: f32[27,512], index: 0, kind: input, shape index: {}]
  %s1 = inlined_call_operand.hbm [shape: f32[13,27], index: 1, kind: input, shape index: {}]
  %s2 = inlined_call_operand.vmem [shape: f32[13,1], index: 2, kind: output, shape index: {0}]
  %s3 = inlined_call_operand.vmem [shape: f32[13,1], index: 3, kind: output, shape index: {1}]
  %4 = xla_tuple %s2, %s3
  %s5 = sld [smem:[#allocation0]]
  $region61: #{tpu_custom_call.1} parent=0
    _
  %s7 = ssub.s32 1, %s5
  %s8 = scalar_select 0, %s7, %s5
  $region1: #{tpu_custom_call.1} parent=0
    #allocation2 [shape = 'u8[32768]{0}', space=vmem, size = 0x8000, scoped, tag = 'input window, operand 0']
    #allocation3 [shape = 's32[2]{0}', space=sflag, size = 0x8, scoped, tag = 'scoped memory for tpu_custom_call.1']
    #allocation4 [shape = 'u8[8192]{0}', space=vmem, size = 0x2000, scoped, tag = 'input window, operand 1, single buffered']
    #allocation5 [shape = 's32[1]{0}', space=sflag, size = 0x4, scoped, tag = 'scoped memory for tpu_custom_call.1']
    %9 = vsyncpa [#allocation3], 0
    %s10 = scalar_lea.sflag [#allocation3], 1
    %11 = vsyncpa %s10, 0
    %12 = vsyncpa [#allocation5], 0
    loop: start=0, step=1, limit=6
    $region2: #{tpu_custom_call.1} parent=1 // loop_pre_header
      _
    $region3: #{tpu_custom_call.1} parent=1 // loop_header
      %s14 = sphi 0, %s18
      %p15 = scmp.ge.s32.totalorder %s14, 6
      %s24 = sphi 0, %s26
      %s27 = sphi 0, %s24
      %s28 = sphi 0, %s27
      %s44 = sphi 0, %s28
      %s48 = sphi 0, %s48
      %s50 = sphi 0, %s48
      %s51 = sphi 0, %s50
      %s65 = sphi 0, %s51
      %s69 = sphi 0, %s69
      %s71 = sphi 0, %s69
      %s72 = sphi 0, %s71
      %s86 = sphi 0, %s72
      %s90 = sphi 0, %s90
      %s92 = sphi 0, %s90
      %s93 = sphi 0, %s92
      %s107 = sphi 0, %s93
    $region4: #{tpu_custom_call.1} parent=1 // loop_header_branch
      %17 = sbr.rel (%p15) target = $region8
    $region5: #{tpu_custom_call.1} parent=1 // loop_body
      %s19 = ssub.s32 %s14, 1
      %s20 = ssub.s32 %s14, 2
      %s21 = sadd.s32 %s14, 1
      %s22 = ssub.s32 %s14, %s21
      %p23 = scmp.eq.s32.totalorder %s22, 0
      %s25 = sadd.s32 %s24, 1
      %s26 = scalar_select %p23, %s24, %s25
      %p29 = pneg %p23
      %p30 = scmp.eq.s32.totalorder %s14, 3
      %p31 = por %p29, %p30
      %p32 = scmp.ne.s32.totalorder %s24, %s27
      %p33 = scmp.eq.s32.totalorder %s14, 0
      %p34 = por %p32, %p33
      %p35 = scmp.ne.s32.totalorder %s24, %s27
      %p36 = scmp.eq.s32.totalorder %s19, 3
      %p37 = por %p35, %p36
      %p38 = scmp.ne.s32.totalorder %s27, %s28
      %p39 = scmp.eq.s32.totalorder %s19, 0
      %p40 = por %p38, %p39
      %p41 = scmp.ne.s32.totalorder %s27, %s28
      %p42 = scmp.eq.s32.totalorder %s20, 3
      %p43 = por %p41, %p42
      %p45 = scmp.ne.s32.totalorder %s28, %s44
      %p46 = scmp.eq.s32.totalorder %s20, 0
      %p47 = por %p45, %p46
      %s49 = sadd.s32 %s48, 1
      %p52 = scmp.eq.s32.totalorder %s14, 3
      %p53 = scmp.ne.s32.totalorder %s48, %s50
      %p54 = scmp.eq.s32.totalorder %s14, 0
      %p55 = por %p53, %p54
      %p56 = scmp.ne.s32.totalorder %s48, %s50
      %p57 = scmp.eq.s32.totalorder %s19, 3
      %p58 = por %p56, %p57
      %p59 = scmp.ne.s32.totalorder %s50, %s51
      %p60 = scmp.eq.s32.totalorder %s19, 0
      %p61 = por %p59, %p60
      %p62 = scmp.ne.s32.totalorder %s50, %s51
      %p63 = scmp.eq.s32.totalorder %s20, 3
      %p64 = por %p62, %p63
      %p66 = scmp.ne.s32.totalorder %s51, %s65
      %p67 = scmp.eq.s32.totalorder %s20, 0
      %p68 = por %p66, %p67
      %s70 = sadd.s32 %s69, 1
      %p73 = scmp.eq.s32.totalorder %s14, 3
      %p74 = scmp.ne.s32.totalorder %s69, %s71
      %p75 = scmp.eq.s32.totalorder %s14, 0
      %p76 = por %p74, %p75
      %p77 = scmp.ne.s32.totalorder %s69, %s71
      %p78 = scmp.eq.s32.totalorder %s19, 3
      %p79 = por %p77, %p78
      %p80 = scmp.ne.s32.totalorder %s71, %s72
      %p81 = scmp.eq.s32.totalorder %s19, 0
      %p82 = por %p80, %p81
      %p83 = scmp.ne.s32.totalorder %s71, %s72
      %p84 = scmp.eq.s32.totalorder %s20, 3
      %p85 = por %p83, %p84
      %p87 = scmp.ne.s32.totalorder %s72, %s86
      %p88 = scmp.eq.s32.totalorder %s20, 0
      %p89 = por %p87, %p88
      %s91 = sadd.s32 %s90, 1
      %p94 = scmp.eq.s32.totalorder %s14, 3
      %p95 = scmp.ne.s32.totalorder %s90, %s92
      %p96 = scmp.eq.s32.totalorder %s14, 0
      %p97 = por %p95, %p96
      %p98 = scmp.ne.s32.totalorder %s90, %s92
      %p99 = scmp.eq.s32.totalorder %s19, 3
      %p100 = por %p98, %p99
      %p101 = scmp.ne.s32.totalorder %s92, %s93
      %p102 = scmp.eq.s32.totalorder %s19, 0
      %p103 = por %p101, %p102
      %p104 = scmp.ne.s32.totalorder %s92, %s93
      %p105 = scmp.eq.s32.totalorder %s20, 3
      %p106 = por %p104, %p105
      %p108 = scmp.ne.s32.totalorder %s93, %s107
      %p109 = scmp.eq.s32.totalorder %s20, 0
      %p110 = por %p108, %p109
      %p111 = scmp.le.s32.totalorder 1, %s14
      %p112 = scmp.lt.s32.totalorder %s14, 5
      %p113 = pnand %p111, %p112
      %p114 = pneg %p113
      // Predicated region
      $region9: #{tpu_custom_call.1} parent=5 // pred_check
        _
      $region10: #{tpu_custom_call.1} parent=5 // pred_check_branch
        %116 = sbr.rel (%p113) target = $region12
      $region11: #{tpu_custom_call.1} parent=5 // pred_region
        %s117 = ssub.s32 %s14, 1
        // Predicated region
        $region13: #{tpu_custom_call.1} parent=11 // pred_check
          %p118 = pneg %p61
        $region14: #{tpu_custom_call.1} parent=11 // pred_check_branch
          %120 = sbr.rel (%p118) target = $region16
        $region15: #{tpu_custom_call.1} parent=11 // pred_region
          %122 = vsyncadd [#allocation5], 0
          %s123 = sshll.u32 %s1, 4
          %s124 = int_to_ptr.hbm [resolvable:$true] %s123
          %s125 = sshll.u32 [#allocation4], 4
          %s126 = int_to_ptr.vmem [resolvable:$true] %s125
          %131 = dma.hbm_to_vmem [thread:$0]  %s124, 256, %s126, [#allocation5], 128, 128, 8
        $region16: #{tpu_custom_call.1} parent=11 // pred_fallthru
          _
      $region12: #{tpu_custom_call.1} parent=5 // pred_fallthru
        _
      %p132 = scmp.lt.s32.totalorder %s14, 4
      // Predicated region
      $region17: #{tpu_custom_call.1} parent=5 // pred_check
        %p133 = pneg %p132
      $region18: #{tpu_custom_call.1} parent=5 // pred_check_branch
        %135 = sbr.rel (%p133) target = $region20
      $region19: #{tpu_custom_call.1} parent=5 // pred_region
        // Predicated region
        $region21: #{tpu_custom_call.1} parent=19 // pred_check
          %p136 = pneg %p34
        $region22: #{tpu_custom_call.1} parent=19 // pred_check_branch
          %138 = sbr.rel (%p136) target = $region24
        $region23: #{tpu_custom_call.1} parent=19 // pred_region
          %s139 = sand.u32 %s24, 1
          %s140 = scalar_lea.sflag [#allocation3], %s139
          %s141 = sand.u32 %s24, 1
          %s142 = smul.addr %s141, 32
          %s143 = scalar_lea.vmem [#allocation2], %s142
          %145 = vsyncadd %s140, 0
          %s146 = smul.addr %s14, 8
          %s147 = scalar_lea.hbm %s0, %s146
          %s148 = sshll.u32 %s147, 4
          %s149 = int_to_ptr.hbm [resolvable:$true] %s148
          %s150 = sshll.u32 %s143, 4
          %s151 = int_to_ptr.vmem [resolvable:$true] %s150
          %156 = dma.hbm_to_vmem [thread:$0]  %s149, 512, %s151, %s140, 512, 128, 8
        $region24: #{tpu_custom_call.1} parent=19 // pred_fallthru
          _
      $region20: #{tpu_custom_call.1} parent=5 // pred_fallthru
        _
      %p157 = scmp.le.s32.totalorder 1, %s14
      %p158 = scmp.lt.s32.totalorder %s14, 5
      %p159 = pnand %p157, %p158
      %p160 = pneg %p159
      // Predicated region
      $region25: #{tpu_custom_call.1} parent=5 // pred_check
        _
      $region26: #{tpu_custom_call.1} parent=5 // pred_check_branch
        %162 = sbr.rel (%p159) target = $region28
      $region27: #{tpu_custom_call.1} parent=5 // pred_region
        %s163 = ssub.s32 %s14, 1
        %s164 = sand.u32 %s27, 1
        %s165 = scalar_lea.sflag [#allocation3], %s164
        %s166 = sand.u32 %s27, 1
        %s167 = smul.addr %s166, 32
        %s168 = scalar_lea.vmem [#allocation2], %s167
        // Predicated region
        $region29: #{tpu_custom_call.1} parent=27 // pred_check
          %p169 = pneg %p40
        $region30: #{tpu_custom_call.1} parent=27 // pred_check_branch
          %171 = sbr.rel (%p169) target = $region32
        $region31: #{tpu_custom_call.1} parent=27 // pred_region
          %173 = dma.done %s165, 512
        $region32: #{tpu_custom_call.1} parent=27 // pred_fallthru
          _
        // Predicated region
        $region33: #{tpu_custom_call.1} parent=27 // pred_check
          %p174 = pneg %p61
        $region34: #{tpu_custom_call.1} parent=27 // pred_check_branch
          %176 = sbr.rel (%p174) target = $region36
        $region35: #{tpu_custom_call.1} parent=27 // pred_region
          %178 = dma.done [#allocation5], 256
        $region36: #{tpu_custom_call.1} parent=27 // pred_fallthru
          _
        %s179 = sand.u32 %s27, 1
        %s180 = scalar_lea.sflag [#allocation3], %s179
        %s181 = sand.u32 %s27, 1
        %s182 = smul.addr %s181, 32
        %s183 = scalar_lea.vmem [#allocation2], %s182
        %p184 = pneg %p40
        %p185 = pneg %p37
        %p186 = pneg %p61
        %p187 = pneg %p58
        %p188 = pneg %p82
        %p189 = pneg %p79
        %p190 = pneg %p103
        %p191 = pneg %p100
        %p192 = scmp.eq.s32.totalorder %s19, 0
        // Predicated region
        $region37: #{tpu_custom_call.1} parent=27 // pred_check
          %p193 = pneg %p192
        $region38: #{tpu_custom_call.1} parent=27 // pred_check_branch
          %195 = sbr.rel (%p193) target = $region40
        $region39: #{tpu_custom_call.1} parent=27 // pred_region
          %vm196 = vcmask 7168
          %197 = vst.msk [vmem:[%s2] sm:$0xff] %vm196, 0.0
          %vm198 = vcmask 4096
          %199 = vst.msk [vmem:[%s2 + $0x8] sm:$0x1f] %vm198, 0.0
          %200 = vst.msk [vmem:[%s3] sm:$0xff] %vm196, 0.0
          %201 = vst.msk [vmem:[%s3 + $0x8] sm:$0x1f] %vm198, 0.0
        $region40: #{tpu_custom_call.1} parent=27 // pred_fallthru
          _
        %v202 = vld [vmem:[#allocation4] sm:$0xff]
        %v203 = vld [vmem:[#allocation4 + $0x8] sm:$0x1f]
        %v204 = vld [vmem:[%s168] sm:$0xff]
        %v205 = vld [vmem:[%s168 + $0x8] sm:$0xff]
        %v206 = vld [vmem:[%s168 + $0x10] sm:$0xff]
        %v207 = vld [vmem:[%s168 + $0x18] sm:$0x7]
        %vm208 = vcmask 220160
        %v210 = vsel %vm208, %v202, 0
        %v213 = vsel %vm208, %v203, 0
        %vm215 = vcmask 1042432
        %v217 = vsel %vm215, %v207, 0
        %219 = vmatpush.msra.mxu0 0.0
        %220 = vmatpush.msra.mxu0 0.0
        %221 = vmatpush.msra.mxu0 0.0
        %222 = vmatpush.msra.mxu0 0.0
        %223 = vmatpush.msra.mxu0 0.0
        %224 = vmatpush.msra.mxu0 0.0
        %225 = vmatpush.msra.mxu0 0.0
        %226 = vmatpush.msra.mxu0 0.0
        %227 = vmatpush.msra.mxu0 0.0
        %228 = vmatpush.msra.mxu0 0.0
        %229 = vmatpush.msra.mxu0 0.0
        %230 = vmatpush.msra.mxu0 0.0
        %231 = vmatpush.msra.mxu0 %v217
        %232 = vmatpush.msra.mxu0 %v206
        %233 = vmatpush.msra.mxu0 %v205
        %234 = vmatpush.msra.mxu0 %v204
        %235 = vmatmul.f32.gmra.mxu0 %v210
        %v236 = vpop.f32.mrf.mxu0
        %v237 = vadd.f32 0.0, %v236
        %238 = vmatmul.f32.gmra.mxu0 %v213
        %v239 = vpop.f32.mrf.mxu0
        %v240 = vadd.f32 0.0, %v239
        %241 = vdwg.mxu0
        %v242 = vld [vmem:[%s2] sm:$0xff]
        %v243 = vld [vmem:[%s2 + $0x8] sm:$0x1f]
        %244 = vadd.xlane.f32.xlu0 %v237
        %v245 = vpop.xlane.xlu0 %244
        %vm246 = vcmask 1044480
        %v247 = vsel %vm246, %v240, 0.0
        %248 = vadd.xlane.f32.xlu0 %v247
        %v249 = vpop.xlane.xlu0 %248
        %v250 = vadd.f32 %v242, %v245
        %v251 = vadd.f32 %v243, %v249
        %vm252 = vcmask 7168
        %253 = vst.msk [vmem:[%s2] sm:$0xff] %vm252, %v250
        %vm254 = vcmask 4096
        %255 = vst.msk [vmem:[%s2 + $0x8] sm:$0x1f] %vm254, %v251
        %v256 = vld [vmem:[%s3] sm:$0xff]
        %v257 = vld [vmem:[%s3 + $0x8] sm:$0x1f]
        %v258 = vmul.f32 %v237, %v237
        %v259 = vmul.f32 %v240, %v240
        %260 = vadd.xlane.f32.xlu0 %v258
        %v261 = vpop.xlane.xlu0 %260
        %v262 = vsel %vm246, %v259, 0.0
        %263 = vadd.xlane.f32.xlu0 %v262
        %v264 = vpop.xlane.xlu0 %263
        %v265 = vadd.f32 %v256, %v261
        %v266 = vadd.f32 %v257, %v264
        %267 = vst.msk [vmem:[%s3] sm:$0xff] %vm252, %v265
        %268 = vst.msk [vmem:[%s3 + $0x8] sm:$0x1f] %vm254, %v266
        // Predicated region
        $region41: #{tpu_custom_call.1} parent=27 // pred_check
          %p269 = pneg %p79
        $region42: #{tpu_custom_call.1} parent=27 // pred_check_branch
          %271 = sbr.rel (%p269) target = $region44
        $region43: #{tpu_custom_call.1} parent=27 // pred_region
          _
        $region44: #{tpu_custom_call.1} parent=27 // pred_fallthru
          _
        // Predicated region
        $region45: #{tpu_custom_call.1} parent=27 // pred_check
          %p272 = pneg %p100
        $region46: #{tpu_custom_call.1} parent=27 // pred_check_branch
          %274 = sbr.rel (%p272) target = $region48
        $region47: #{tpu_custom_call.1} parent=27 // pred_region
          _
        $region48: #{tpu_custom_call.1} parent=27 // pred_fallthru
          _
        // Predicated region
        $region49: #{tpu_custom_call.1} parent=27 // pred_check
          %p275 = pneg %p79
        $region50: #{tpu_custom_call.1} parent=27 // pred_check_branch
          %277 = sbr.rel (%p275) target = $region52
        $region51: #{tpu_custom_call.1} parent=27 // pred_region
          _
        $region52: #{tpu_custom_call.1} parent=27 // pred_fallthru
          _
        // Predicated region
        $region53: #{tpu_custom_call.1} parent=27 // pred_check
          %p278 = pneg %p100
        $region54: #{tpu_custom_call.1} parent=27 // pred_check_branch
          %280 = sbr.rel (%p278) target = $region56
        $region55: #{tpu_custom_call.1} parent=27 // pred_region
          _
        $region56: #{tpu_custom_call.1} parent=27 // pred_fallthru
          _
      $region28: #{tpu_custom_call.1} parent=5 // pred_fallthru
        _
      %p281 = scmp.le.s32.totalorder 2, %s14
      // Predicated region
      $region57: #{tpu_custom_call.1} parent=5 // pred_check
        %p282 = pneg %p281
      $region58: #{tpu_custom_call.1} parent=5 // pred_check_branch
        %284 = sbr.rel (%p282) target = $region60
      $region59: #{tpu_custom_call.1} parent=5 // pred_region
        %s285 = ssub.s32 %s14, 2
      $region60: #{tpu_custom_call.1} parent=5 // pred_fallthru
        _
    $region6: #{tpu_custom_call.1} parent=1 // loop_footer
      %s18 = sadd.s32 1, %s14
    $region7: #{tpu_custom_call.1} parent=1 // loop_footer_branch
      %13 = sbr.rel target = $region3
    $region8: #{tpu_custom_call.1} parent=1 // loop_exit
      _
    %286 = vsyncpa [#allocation3], 1
    %s287 = scalar_lea.sflag [#allocation3], 1
    %288 = vsyncpa %s287, 1
    %289 = vsyncpa [#allocation5], 1

</llo_original>
